<compile_context>
chip_gen: v7x
topology: tpu7x:2x2x1
jax: 0.10.0
libtpu: 0.0.40
codegen_flags: <defaults>
</compile_context>

<pallas_src>
import functools

import jax
import jax.numpy as jnp
from jax.experimental import pallas as pl
from jax.experimental.pallas import tpu as pltpu

LANES = 128
MAX_TR = 8192                          # rows per grid step per input (f32: 4 MiB blocks)
N_SPLIT_MAX = 2                        # leading "parallel" axis -> megacore split on v7x
VMEM_LIMIT_BYTES = 40 * 1024 * 1024    # 2 inputs x 2 bufs x 4 MiB + temps; > v5e's 16 MiB default


def _fold_width(n_rows):
    """Widest accumulator height in {32,16,8} dividing n_rows (independent add chains)."""
    for f in (32, 16, 8):
        if n_rows % f == 0:
            return f
    return n_rows


def _hinge_f32(x, sign):
    """relu(1 + sign*x): elementwise in native dtype (bf16 stays bf16), f32 out."""
    if x.dtype not in (jnp.dtype(jnp.float32), jnp.dtype(jnp.bfloat16)):
        x = x.astype(jnp.float32)
    h = jnp.maximum(1.0 + x, 0.0) if sign > 0 else jnp.maximum(1.0 - x, 0.0)
    return h.astype(jnp.float32)


def _hinge_partial_kernel(*refs, signs, fold, tr, nblocks, last_rows):
    """Accumulate per-split partial sums of relu(1 + sign*x) for each input.

    Output block layout: input idx owns out_ref[idx*fold:(idx+1)*fold, :].
    Steady-state path is mask-free; only the (at most one) partial tail block
    takes a statically-sliced reduced-height path, and clamped duplicate grid
    slots (from the megacore split) are skipped entirely with pl.when.
    """
    in_refs, out_ref = refs[:-1], refs[-1]
    i = pl.program_id(0)               # megacore split (parallel)
    j = pl.program_id(1)               # sequential reduction steps
    nj = pl.num_programs(1)
    blk = i * nj + j

    @pl.when(j == 0)
    def _():
        out_ref[...] = jnp.zeros_like(out_ref)

    def accumulate(n_rows):
        f = _fold_width(n_rows)
        for idx, (ref, sign) in enumerate(zip(in_refs, signs)):
            h = _hinge_f32(ref[0:n_rows, :], sign)           # static slice, no mask
            out_ref[idx * fold:idx * fold + f, :] += (
                h.reshape(n_rows // f, f, LANES).sum(axis=0))

    if last_rows == tr:                 # every real block is full
        @pl.when(blk < nblocks)
        def _():
            accumulate(tr)
    else:                               # exactly one partial tail block
        @pl.when(blk < nblocks - 1)
        def _():
            accumulate(tr)

        @pl.when(blk == nblocks - 1)
        def _():
            accumulate(last_rows)


def _hinge_partial_sums(mains, signs):
    """Streaming reduction over equally-shaped (rows,128) arrays; one f32 sum per input."""
    rows = mains[0].shape[0]
    n_in = len(mains)
    tr = min(MAX_TR, rows)
    nblocks = pl.cdiv(rows, tr)
    last_rows = rows - (nblocks - 1) * tr
    nsplit = N_SPLIT_MAX if nblocks >= N_SPLIT_MAX else 1
    steps = pl.cdiv(nblocks, nsplit)
    fold = _fold_width(tr)

    def in_index_map(i, j):
        # Clamp the (at most one) slot past the last real block; the kernel
        # skips its accumulation via pl.when.
        return (jnp.minimum(i * steps + j, nblocks - 1), 0)

    kernel = functools.partial(
        _hinge_partial_kernel,
        signs=signs, fold=fold, tr=tr, nblocks=nblocks, last_rows=last_rows)

    partials = pl.pallas_call(
        kernel,
        out_shape=jax.ShapeDtypeStruct((nsplit * n_in * fold, LANES), jnp.float32),
        grid_spec=pltpu.PrefetchScalarGridSpec(
            num_scalar_prefetch=0,
            grid=(nsplit, steps),
            in_specs=[pl.BlockSpec((tr, LANES), in_index_map) for _ in mains],
            out_specs=pl.BlockSpec((n_in * fold, LANES), lambda i, j: (i, 0)),
        ),
        compiler_params=pltpu.CompilerParams(
            dimension_semantics=("parallel", "arbitrary"),
            vmem_limit_bytes=VMEM_LIMIT_BYTES),
    )(*mains)

    # Tiny final cross-lane reduction of the lane-dense partial sums.
    return partials.reshape(nsplit, n_in, fold, LANES).sum(axis=(0, 2, 3))


def _prep(x):
    """Flatten to a native-dtype (rows,128) aligned prefix + tiny (<sub*128) tail.

    No full-tensor pad copy; the tail is folded in with plain JAX."""
    numel = x.size
    flat = x.reshape(-1)
    sub = 16 if jnp.dtype(x.dtype).itemsize < 4 else 8
    chunk = sub * LANES
    aligned = (numel // chunk) * chunk
    main = None
    if aligned:
        main_flat = flat if aligned == numel else flat[:aligned]
        main = main_flat.reshape(aligned // LANES, LANES)
    tail = flat[aligned:] if aligned < numel else None
    return main, tail


def _tail_sum(tail, sign):
    if tail is None:
        return jnp.zeros((), jnp.float32)
    t = tail.astype(jnp.float32)
    h = jnp.maximum(1.0 + t, 0.0) if sign > 0 else jnp.maximum(1.0 - t, 0.0)
    return jnp.sum(h)


def sn_dis_loss(pos, neg, weight=0.5):
    """Pallas implementation of SNDisLoss.forward (weight is a Python float)."""
    pos_main, pos_tail = _prep(pos)
    neg_main, neg_tail = _prep(neg)

    fuse = (pos_main is not None and neg_main is not None
            and pos_main.shape == neg_main.shape
            and pos_main.dtype == neg_main.dtype)
    if fuse:
        # One fused pallas_call: both tensors stream through the same grid.
        sums = _hinge_partial_sums((pos_main, neg_main), signs=(-1.0, 1.0))
        pos_sum, neg_sum = sums[0], sums[1]
    else:
        pos_sum = (_hinge_partial_sums((pos_main,), signs=(-1.0,))[0]
                   if pos_main is not None else jnp.zeros((), jnp.float32))
        neg_sum = (_hinge_partial_sums((neg_main,), signs=(1.0,))[0]
                   if neg_main is not None else jnp.zeros((), jnp.float32))

    pos_sum = pos_sum + _tail_sum(pos_tail, -1.0)
    neg_sum = neg_sum + _tail_sum(neg_tail, 1.0)

    loss_pos = (float(weight) / float(pos.size)) * pos_sum
    loss_neg = (float(weight) / float(neg.size)) * neg_sum
    return loss_pos, loss_neg


if __name__ == "__main__":
    key = jax.random.PRNGKey(0)
    k1, k2, k3, k4 = jax.random.split(key, 4)

    loss_fn = jax.jit(functools.partial(sn_dis_loss, weight=0.5))

    # Discriminator outputs for real (pos) and fake (neg) samples, NCHW.
    pos = jax.random.normal(k1, (2, 4, 16, 16), dtype=jnp.float32)
    neg = jax.random.normal(k2, (2, 4, 16, 16), dtype=jnp.float32)
    loss_pos, loss_neg = loss_fn(pos, neg)
    jax.block_until_ready((loss_pos, loss_neg))

    ref_pos = 0.5 * jnp.mean(jnp.maximum(1.0 - pos, 0.0))
    ref_neg = 0.5 * jnp.mean(jnp.maximum(1.0 + neg, 0.0))
    assert jnp.allclose(loss_pos, ref_pos, rtol=1e-5, atol=1e-6), (loss_pos, ref_pos)
    assert jnp.allclose(loss_neg, ref_neg, rtol=1e-5, atol=1e-6), (loss_neg, ref_neg)

    # Misaligned shape: exercises aligned-prefix kernel + plain-JAX tail path.
    pos2 = jax.random.normal(k3, (2, 4, 17, 17), dtype=jnp.float32)
    neg2 = jax.random.normal(k4, (2, 4, 17, 17), dtype=jnp.float32)
    lp2, ln2 = loss_fn(pos2, neg2)
    jax.block_until_ready((lp2, ln2))
    rp2 = 0.5 * jnp.mean(jnp.maximum(1.0 - pos2, 0.0))
    rn2 = 0.5 * jnp.mean(jnp.maximum(1.0 + neg2, 0.0))
    assert jnp.allclose(lp2, rp2, rtol=1e-5, atol=1e-6), (lp2, rp2)
    assert jnp.allclose(ln2, rn2, rtol=1e-5, atol=1e-6), (ln2, rn2)

    print("KERNEL_OK")
</pallas_src>

<mosaic_0001>
module attributes {stable_mosaic.version = 11 : i64} {
  func.func @_hinge_partial_kernel(%arg0: i32, %arg1: i32, %arg2: memref<16x128xf32, #tpu.memory_space<vmem>>, %arg3: memref<16x128xf32, #tpu.memory_space<vmem>>, %arg4: memref<32x128xf32, #tpu.memory_space<vmem>>) attributes {dimension_semantics = [#tpu.dimension_semantics<parallel>, #tpu.dimension_semantics<arbitrary>], iteration_bounds = array<i64: 1, 1>, scalar_prefetch = 0 : i64, scratch_operands = 0 : i64, tpu.core_type = #tpu.core_type<tc>, window_params = [{transform_indices = @transform_0, window_bounds = array<i64: 16, 128>}, {transform_indices = @transform_1, window_bounds = array<i64: 16, 128>}, {transform_indices = @transform_2, window_bounds = array<i64: 32, 128>}]} {
    %c1_i32 = arith.constant 1 : i32
    %0 = arith.muli %arg0, %c1_i32 : i32
    %1 = arith.addi %0, %arg1 : i32
    %c0_i32 = arith.constant 0 : i32
    %2 = arith.cmpi eq, %arg1, %c0_i32 : i32
    %3 = arith.extui %2 : i1 to i32
    %c0_i32_0 = arith.constant 0 : i32
    %4 = arith.cmpi ne, %3, %c0_i32_0 : i32
    scf.if %4 {
      %cst = arith.constant 0.000000e+00 : f32
      %8 = vector.broadcast %cst : f32 to vector<32x128xf32>
      %c0 = arith.constant 0 : index
      %c0_3 = arith.constant 0 : index
      %9 = vector.load %arg4[%c0, %c0_3] : memref<32x128xf32, #tpu.memory_space<vmem>>, vector<32x128xf32>
      tpu.vector_store %arg4[%c0, %c0_3], %8 {strides = array<i32>} : memref<32x128xf32, #tpu.memory_space<vmem>>, vector<32x128xf32>,
    } else {
    }
    %c1_i32_1 = arith.constant 1 : i32
    %5 = arith.cmpi slt, %1, %c1_i32_1 : i32
    %6 = arith.extui %5 : i1 to i32
    %c0_i32_2 = arith.constant 0 : i32
    %7 = arith.cmpi ne, %6, %c0_i32_2 : i32
    scf.if %7 {
      %c0 = arith.constant 0 : index
      %c0_3 = arith.constant 0 : index
      %8 = vector.load %arg2[%c0, %c0_3] : memref<16x128xf32, #tpu.memory_space<vmem>>, vector<16x128xf32>
      %cst = arith.constant 1.000000e+00 : f32
      %9 = vector.broadcast %cst : f32 to vector<16x128xf32>
      %10 = arith.subf %9, %8 : vector<16x128xf32>
      %cst_4 = arith.constant 0.000000e+00 : f32
      %11 = vector.broadcast %cst_4 : f32 to vector<16x128xf32>
      %12 = arith.maximumf %10, %11 : vector<16x128xf32>
      %c0_5 = arith.constant 0 : index
      %c0_6 = arith.constant 0 : index
      %13 = vector.load %arg4[%c0_5, %c0_6] : memref<32x128xf32, #tpu.memory_space<vmem>>, vector<16x128xf32>
      %14 = vector.shape_cast %12 : vector<16x128xf32> to vector<1x16x128xf32>
      %cst_7 = arith.constant dense<0.000000e+00> : vector<16x128xf32>
      %15 = vector.multi_reduction <add>, %14, %cst_7 [0] : vector<1x16x128xf32> to vector<16x128xf32>
      %16 = arith.addf %13, %15 : vector<16x128xf32>
      %c0_8 = arith.constant 0 : index
      %c0_9 = arith.constant 0 : index
      %17 = vector.load %arg4[%c0_8, %c0_9] : memref<32x128xf32, #tpu.memory_space<vmem>>, vector<16x128xf32>
      tpu.vector_store %arg4[%c0_8, %c0_9], %16 {strides = array<i32>} : memref<32x128xf32, #tpu.memory_space<vmem>>, vector<16x128xf32>,
      %c0_10 = arith.constant 0 : index
      %c0_11 = arith.constant 0 : index
      %18 = vector.load %arg3[%c0_10, %c0_11] : memref<16x128xf32, #tpu.memory_space<vmem>>, vector<16x128xf32>
      %cst_12 = arith.constant 1.000000e+00 : f32
      %19 = vector.broadcast %cst_12 : f32 to vector<16x128xf32>
      %20 = arith.addf %19, %18 : vector<16x128xf32>
      %cst_13 = arith.constant 0.000000e+00 : f32
      %21 = vector.broadcast %cst_13 : f32 to vector<16x128xf32>
      %22 = arith.maximumf %20, %21 : vector<16x128xf32>
      %c16 = arith.constant 16 : index
      %c0_14 = arith.constant 0 : index
      %23 = vector.load %arg4[%c16, %c0_14] : memref<32x128xf32, #tpu.memory_space<vmem>>, vector<16x128xf32>
      %24 = vector.shape_cast %22 : vector<16x128xf32> to vector<1x16x128xf32>
      %cst_15 = arith.constant dense<0.000000e+00> : vector<16x128xf32>
      %25 = vector.multi_reduction <add>, %24, %cst_15 [0] : vector<1x16x128xf32> to vector<16x128xf32>
      %26 = arith.addf %23, %25 : vector<16x128xf32>
      %c16_16 = arith.constant 16 : index
      %c0_17 = arith.constant 0 : index
      %27 = vector.load %arg4[%c16_16, %c0_17] : memref<32x128xf32, #tpu.memory_space<vmem>>, vector<16x128xf32>
      tpu.vector_store %arg4[%c16_16, %c0_17], %26 {strides = array<i32>} : memref<32x128xf32, #tpu.memory_space<vmem>>, vector<16x128xf32>,
    } else {
    }
    return
  }
  func.func @transform_0(%arg0: i32, %arg1: i32) -> (i32, i32) {
    %c1_i32 = arith.constant 1 : i32
    %0 = arith.muli %arg0, %c1_i32 : i32
    %1 = arith.addi %0, %arg1 : i32
    %c0_i32 = arith.constant 0 : i32
    %2 = arith.minsi %1, %c0_i32 : i32
    %c0_i32_0 = arith.constant 0 : i32
    %c0_i32_1 = arith.constant 0 : i32
    return %2, %c0_i32_0 : i32, i32
  }
  func.func @transform_1(%arg0: i32, %arg1: i32) -> (i32, i32) {
    %c1_i32 = arith.constant 1 : i32
    %0 = arith.muli %arg0, %c1_i32 : i32
    %1 = arith.addi %0, %arg1 : i32
    %c0_i32 = arith.constant 0 : i32
    %2 = arith.minsi %1, %c0_i32 : i32
    %c0_i32_0 = arith.constant 0 : i32
    %c0_i32_1 = arith.constant 0 : i32
    return %2, %c0_i32_0 : i32, i32
  }
  func.func @transform_2(%arg0: i32, %arg1: i32) -> (i32, i32) {
    %c0_i32 = arith.constant 0 : i32
    %c0_i32_0 = arith.constant 0 : i32
    return %arg0, %c0_i32 : i32, i32
  }
}

</mosaic_0001>

<llo_original>
// kernel: sn_dis_loss.1
$region0: #{sn_dis_loss.1}
  #allocation0 [shape = 'u32[]', space=smem, size = 0x4, offset = 0x4, fixed_abs, tag = 'smem constant byte address 0x4 - core index']
  #allocation1 [shape = 'u32[144,128]{1,0:T(1,128)}', space=vmem, size = 0x12000, scoped, tag = 'internal scratch']
  %s0 = inlined_call_operand.vmem [shape: f32[16,128], index: 0, kind: input, shape index: {}]
  %s1 = inlined_call_operand.vmem [shape: f32[16,128], index: 1, kind: input, shape index: {}]
  %s2 = inlined_call_operand.vmem [shape: f32[32,128], index: 2, kind: output, shape index: {}]
  %s3 = sld [smem:[#allocation0]]
  $region26: #{sn_dis_loss.1} parent=0
    _
  %s5 = ssub.s32 1, %s3
  %s6 = scalar_select 0, %s5, %s3
  // Predicated region
  $region2: #{sn_dis_loss.1} parent=0 // pred_check
    _
  $region3: #{sn_dis_loss.1} parent=0 // pred_check_branch
    %8 = sbr.rel (0) target = $region5
  $region4: #{sn_dis_loss.1} parent=0 // pred_region
    %s9 = sadd.s32 0, 0
    %p10 = scmp.lt.s32.totalorder %s9, 0
    %s11 = scalar_select %p10, %s9, 0
    %s12 = smul.u32 2, %s11
    %p13 = scmp.lt.s32.totalorder %s12, 1
    %s14 = scalar_select %p13, %s12, 1
    %s15 = smul.addr %s14, 8
    %s16 = scalar_lea.vmem %s0, %s15
    %s17 = sadd.s32 0, 0
    %p18 = scmp.lt.s32.totalorder %s17, 0
    %s19 = scalar_select %p18, %s17, 0
    %s20 = smul.u32 2, %s19
  $region5: #{sn_dis_loss.1} parent=0 // pred_fallthru
    _
  // Predicated region
  $region6: #{sn_dis_loss.1} parent=0 // pred_check
    _
  $region7: #{sn_dis_loss.1} parent=0 // pred_check_branch
    %22 = sbr.rel (0) target = $region9
  $region8: #{sn_dis_loss.1} parent=0 // pred_region
    %s23 = sadd.s32 0, 0
    %p24 = scmp.lt.s32.totalorder %s23, 0
    %s25 = scalar_select %p24, %s23, 0
    %s26 = smul.u32 2, %s25
    %p27 = scmp.lt.s32.totalorder %s26, 1
    %s28 = scalar_select %p27, %s26, 1
    %s29 = smul.addr %s28, 8
    %s30 = scalar_lea.vmem %s1, %s29
    %s31 = sadd.s32 0, 0
    %p32 = scmp.lt.s32.totalorder %s31, 0
    %s33 = scalar_select %p32, %s31, 0
    %s34 = smul.u32 2, %s33
  $region9: #{sn_dis_loss.1} parent=0 // pred_fallthru
    _
  %s35 = sadd.s32 0, 0
  %p36 = scmp.lt.s32.totalorder %s35, 0
  %s37 = scalar_select %p36, %s35, 0
  %s38 = smul.u32 2, %s37
  %p39 = scmp.lt.s32.totalorder %s38, 1
  %s40 = scalar_select %p39, %s38, 1
  %s41 = smul.addr %s40, 8
  %s42 = scalar_lea.vmem %s0, %s41
  %s43 = sadd.s32 0, 0
  %p44 = scmp.lt.s32.totalorder %s43, 0
  %s45 = scalar_select %p44, %s43, 0
  %s46 = smul.u32 2, %s45
  %p47 = scmp.lt.s32.totalorder %s46, 1
  %s48 = scalar_select %p47, %s46, 1
  %s49 = smul.addr %s48, 8
  %s50 = scalar_lea.vmem %s1, %s49
  %s51 = sadd.s32 0, 0
  %p52 = scmp.lt.s32.totalorder %s51, 0
  %s53 = scalar_select %p52, %s51, 0
  %s54 = smul.u32 2, %s53
  %p55 = scmp.lt.s32.totalorder %s54, 1
  %s56 = scalar_select %p55, %s54, 1
  %s57 = smul.addr %s56, 8
  %s58 = scalar_lea.vmem %s0, %s57
  %s59 = sadd.s32 0, 0
  %p60 = scmp.lt.s32.totalorder %s59, 0
  %s61 = scalar_select %p60, %s59, 0
  %s62 = smul.u32 2, %s61
  %s63 = sadd.s32 0, 0
  %p64 = scmp.lt.s32.totalorder %s63, 0
  %s65 = scalar_select %p64, %s63, 0
  %s66 = smul.u32 2, %s65
  %p67 = scmp.lt.s32.totalorder %s66, 1
  %s68 = scalar_select %p67, %s66, 1
  %s69 = smul.addr %s68, 8
  %s70 = scalar_lea.vmem %s1, %s69
  %s71 = sadd.s32 0, 0
  %p72 = scmp.lt.s32.totalorder %s71, 0
  %s73 = scalar_select %p72, %s71, 0
  %s74 = smul.u32 2, %s73
  %s75 = sadd.s32 0, 0
  %p76 = scmp.eq.s32.totalorder 0, 0
  // Predicated region
  $region10: #{sn_dis_loss.1} parent=0 // pred_check
    %p77 = pneg %p76
  $region11: #{sn_dis_loss.1} parent=0 // pred_check_branch
    %79 = sbr.rel (%p77) target = $region13
  $region12: #{sn_dis_loss.1} parent=0 // pred_region
    %80 = vst [vmem:[%s2] sm:$0xff] 0.0
    %81 = vst [vmem:[%s2 + $0x8] sm:$0xff] 0.0
    %82 = vst [vmem:[%s2 + $0x10] sm:$0xff] 0.0
    %83 = vst [vmem:[%s2 + $0x18] sm:$0xff] 0.0
  $region13: #{sn_dis_loss.1} parent=0 // pred_fallthru
    _
  %p84 = scmp.lt.s32.totalorder %s75, 1
  // Predicated region
  $region14: #{sn_dis_loss.1} parent=0 // pred_check
    %p85 = pneg %p84
  $region15: #{sn_dis_loss.1} parent=0 // pred_check_branch
    %87 = sbr.rel (%p85) target = $region17
  $region16: #{sn_dis_loss.1} parent=0 // pred_region
    %v88 = vld [vmem:[%s58] sm:$0xff]
    %v89 = vld [vmem:[%s58 + $0x8] sm:$0xff]
    %v90 = vsub.f32 1.0, %v88
    %v91 = vsub.f32 1.0, %v89
    %v92 = vmax.f32 %v90, 0.0
    %v93 = vmax.f32 %v91, 0.0
    %v94 = vld [vmem:[%s2] sm:$0xff]
    %v95 = vld [vmem:[%s2 + $0x8] sm:$0xff]
    %v96 = vadd.f32 %v92, 0.0
    %v97 = vadd.f32 %v93, 0.0
    %v98 = vadd.f32 %v94, %v96
    %v99 = vadd.f32 %v95, %v97
    %100 = vst [vmem:[%s2] sm:$0xff] %v98
    %101 = vst [vmem:[%s2 + $0x8] sm:$0xff] %v99
    %v102 = vld [vmem:[%s70] sm:$0xff]
    %v103 = vld [vmem:[%s70 + $0x8] sm:$0xff]
    %v104 = vadd.f32 %v102, 1.0
    %v105 = vadd.f32 %v103, 1.0
    %v106 = vmax.f32 %v104, 0.0
    %v107 = vmax.f32 %v105, 0.0
    %v108 = vld [vmem:[%s2 + $0x10] sm:$0xff]
    %v109 = vld [vmem:[%s2 + $0x18] sm:$0xff]
    %v110 = vadd.f32 %v106, 0.0
    %v111 = vadd.f32 %v107, 0.0
    %v112 = vadd.f32 %v108, %v110
    %v113 = vadd.f32 %v109, %v111
    %114 = vst [vmem:[%s2 + $0x10] sm:$0xff] %v112
    %115 = vst [vmem:[%s2 + $0x18] sm:$0xff] %v113
  $region17: #{sn_dis_loss.1} parent=0 // pred_fallthru
    _
  // Predicated region
  $region18: #{sn_dis_loss.1} parent=0 // pred_check
    _
  $region19: #{sn_dis_loss.1} parent=0 // pred_check_branch
    %117 = sbr.rel (0) target = $region21
  $region20: #{sn_dis_loss.1} parent=0 // pred_region
    _
  $region21: #{sn_dis_loss.1} parent=0 // pred_fallthru
    _
  // Predicated region
  $region22: #{sn_dis_loss.1} parent=0 // pred_check
    _
  $region23: #{sn_dis_loss.1} parent=0 // pred_check_branch
    %119 = sbr.rel (0) target = $region25
  $region24: #{sn_dis_loss.1} parent=0 // pred_region
    _
  $region25: #{sn_dis_loss.1} parent=0 // pred_fallthru
    _

</llo_original>
